<compile_context>
chip_gen: v7x
topology: tpu7x:2x2x1
jax: 0.10.0
libtpu: 0.0.40
codegen_flags: <defaults>
</compile_context>

<pallas_src>
import jax
import jax.numpy as jnp
from jax.experimental import pallas as pl
from jax.experimental.pallas import tpu as pltpu

ZERO_CLIP = 1e-6

# VMEM budget (bytes) for the double-buffered pipeline blocks. Kept modest so
# intermediates + blocks fit comfortably within v7x's 64 MiB physical VMEM.
_PIPELINE_BUDGET_BYTES = 8 * 1024 * 1024
_VMEM_LIMIT_BYTES = 48 * 1024 * 1024
_MAX_BW = 1024  # max lane-tile size over the wh axis


def _round_up(x, m):
    return ((x + m - 1) // m) * m


def _membership_kernel(x_ref, c_ref, scale_ref, out_ref, prod_ref):
    # x_ref     : (Bn, D, Bw)      input tile
    # c_ref     : (D, C, 1)        cluster centers (C on sublanes)
    # scale_ref : (D, C, 1)        precomputed -1 / (2 * lamda^2)
    # out_ref   : (Bn, D, C, Bw)   per-dimension membership
    # prod_ref  : (Bn, C, Bw)      product over D, clamped
    x = x_ref[...]
    c = c_ref[...]
    scale = scale_ref[...]

    diff = x[:, :, None, :] - c[None, :, :, :]        # (Bn, D, C, Bw)
    expo = (diff * diff) * scale[None, :, :, :]       # (Bn, D, C, Bw)
    out_ref[...] = jnp.exp(expo)

    # prod_d exp(expo_d) == exp(sum_d expo_d): replaces D-1 full-width
    # multiplies with adds + one (C, Bw) exp; also robust to underflow.
    s = jnp.sum(expo, axis=1)                         # (Bn, C, Bw)
    prod_ref[...] = jnp.maximum(jnp.exp(s), ZERO_CLIP)


def membership_freeze(x, c, lamda):
    """x: (N, D, wh), c: (D, C), lamda: (D, C).

    Returns (output_clamped: (N, C, wh), out: (N, D, C, wh)),
    matching the PyTorch module's (clamped product, per-dim membership) pair.
    """
    x = jnp.asarray(x, jnp.float32)
    c = jnp.asarray(c, jnp.float32)
    lamda = jnp.asarray(lamda, jnp.float32)

    N, D, wh = x.shape
    Dc, C = c.shape
    assert Dc == D and lamda.shape == (D, C)

    # Pad lane axis (wh) to a multiple of 128 and output sublane axis (C) to a
    # multiple of 8 so all stores are full-width (no masked vst.msk).
    wh_pad = _round_up(wh, 128)
    C_pad = _round_up(C, 8)

    # Tile wh by Bw, then batch as many N rows per grid step as fit the
    # double-buffered VMEM budget.
    Bw = min(wh_pad, _MAX_BW)
    bytes_per_n = 4 * (D * C_pad * Bw + D * Bw + C_pad * Bw)
    Bn = max(1, _PIPELINE_BUDGET_BYTES // (2 * bytes_per_n))
    Bn = min(Bn, N)
    N_pad = _round_up(N, Bn)

    x_p = x
    if wh_pad != wh or N_pad != N:
        x_p = jnp.pad(x, ((0, N_pad - N), (0, 0), (0, wh_pad - wh)))

    # Precompute -1/(2*lamda^2) once and present c/scale as (D, C, 1):
    # C lives on the sublane axis, broadcast over wh is a pure lane broadcast.
    scale = -0.5 / (lamda * lamda)
    if C_pad != C:
        c_pc = jnp.pad(c, ((0, 0), (0, C_pad - C)))
        scale_pc = jnp.pad(scale, ((0, 0), (0, C_pad - C)), constant_values=-0.5)
    else:
        c_pc, scale_pc = c, scale
    c3 = c_pc.reshape(D, C_pad, 1)
    scale3 = scale_pc.reshape(D, C_pad, 1)

    grid = (N_pad // Bn, wh_pad // Bw)

    out_shapes = (
        jax.ShapeDtypeStruct((N_pad, D, C_pad, wh_pad), jnp.float32),  # out
        jax.ShapeDtypeStruct((N_pad, C_pad, wh_pad), jnp.float32),     # product
    )

    grid_spec = pltpu.PrefetchScalarGridSpec(
        num_scalar_prefetch=0,
        grid=grid,
        in_specs=[
            pl.BlockSpec((Bn, D, Bw), lambda i, j: (i, 0, j)),
            pl.BlockSpec((D, C_pad, 1), lambda i, j: (0, 0, 0)),
            pl.BlockSpec((D, C_pad, 1), lambda i, j: (0, 0, 0)),
        ],
        out_specs=[
            pl.BlockSpec((Bn, D, C_pad, Bw), lambda i, j: (i, 0, 0, j)),
            pl.BlockSpec((Bn, C_pad, Bw), lambda i, j: (i, 0, j)),
        ],
    )

    out_p, prod_p = pl.pallas_call(
        _membership_kernel,
        out_shape=out_shapes,
        grid_spec=grid_spec,
        compiler_params=pltpu.CompilerParams(
            dimension_semantics=("parallel", "parallel"),
            vmem_limit_bytes=_VMEM_LIMIT_BYTES,
        ),
    )(x_p, c3, scale3)

    out = out_p[:N, :, :C, :wh]
    prod_clamped = prod_p[:N, :C, :wh]
    return prod_clamped, out


def _reference(x, c, lamda):
    # Pure-JAX reference for correctness check (mirrors the PyTorch module).
    diff = x[:, :, None, :] - c[None, :, :, None]
    out = jnp.exp(-(diff ** 2) / (2.0 * lamda[None, :, :, None] ** 2))
    prod = jnp.prod(out, axis=1)
    return jnp.maximum(prod, ZERO_CLIP), out


if __name__ == "__main__":
    key = jax.random.PRNGKey(0)
    k1, k2, k3 = jax.random.split(key, 3)

    # Small, deliberately unaligned shapes to exercise the C / wh padding path.
    N, D, C, WH = 3, 4, 6, 200
    x = jax.random.normal(k1, (N, D, WH), dtype=jnp.float32)
    c = jax.random.normal(k2, (D, C), dtype=jnp.float32)
    # keep lamda away from zero so 1/lamda^2 is well behaved
    lamda = 0.5 + jax.random.uniform(k3, (D, C), dtype=jnp.float32)

    prod_clamped, out = membership_freeze(x, c, lamda)
    jax.block_until_ready((prod_clamped, out))

    ref_prod, ref_out = _reference(x, c, lamda)
    assert prod_clamped.shape == (N, C, WH)
    assert out.shape == (N, D, C, WH)
    assert jnp.allclose(out, ref_out, atol=1e-5, rtol=2e-5)
    assert jnp.allclose(prod_clamped, ref_prod, atol=1e-5, rtol=2e-5)

    print("KERNEL_OK")
</pallas_src>

<mosaic_0001>
module attributes {stable_mosaic.version = 11 : i64} {
  func.func @_membership_kernel(%arg0: i32, %arg1: i32, %arg2: memref<3x4x256xf32, #tpu.memory_space<vmem>>, %arg3: memref<4x8x1xf32, #tpu.memory_space<vmem>>, %arg4: memref<4x8x1xf32, #tpu.memory_space<vmem>>, %arg5: memref<3x4x8x256xf32, #tpu.memory_space<vmem>>, %arg6: memref<3x8x256xf32, #tpu.memory_space<vmem>>) attributes {dimension_semantics = [#tpu.dimension_semantics<parallel>, #tpu.dimension_semantics<parallel>], iteration_bounds = array<i64: 1, 1>, scalar_prefetch = 0 : i64, scratch_operands = 0 : i64, tpu.core_type = #tpu.core_type<tc>, window_params = [{transform_indices = @transform_0, window_bounds = array<i64: 3, 4, 256>}, {pipeline_mode = #tpu.pipeline_mode<synchronous>, transform_indices = @transform_1, window_bounds = array<i64: 4, 8, 1>}, {pipeline_mode = #tpu.pipeline_mode<synchronous>, transform_indices = @transform_2, window_bounds = array<i64: 4, 8, 1>}, {transform_indices = @transform_3, window_bounds = array<i64: 3, 4, 8, 256>}, {transform_indices = @transform_4, window_bounds = array<i64: 3, 8, 256>}]} {
    %c0 = arith.constant 0 : index
    %c0_0 = arith.constant 0 : index
    %c0_1 = arith.constant 0 : index
    %0 = vector.load %arg2[%c0, %c0_0, %c0_1] : memref<3x4x256xf32, #tpu.memory_space<vmem>>, vector<3x4x256xf32>
    %c0_2 = arith.constant 0 : index
    %c0_3 = arith.constant 0 : index
    %c0_4 = arith.constant 0 : index
    %1 = vector.load %arg3[%c0_2, %c0_3, %c0_4] : memref<4x8x1xf32, #tpu.memory_space<vmem>>, vector<4x8x1xf32>
    %c0_5 = arith.constant 0 : index
    %c0_6 = arith.constant 0 : index
    %c0_7 = arith.constant 0 : index
    %2 = vector.load %arg4[%c0_5, %c0_6, %c0_7] : memref<4x8x1xf32, #tpu.memory_space<vmem>>, vector<4x8x1xf32>
    %3 = vector.shape_cast %0 : vector<3x4x256xf32> to vector<3x4x1x256xf32>
    %4 = vector.shape_cast %1 : vector<4x8x1xf32> to vector<1x4x8x1xf32>
    %5 = vector.broadcast %3 : vector<3x4x1x256xf32> to vector<3x4x8x256xf32>
    %6 = vector.broadcast %4 : vector<1x4x8x1xf32> to vector<3x4x8x256xf32>
    %7 = arith.subf %5, %6 : vector<3x4x8x256xf32>
    %8 = arith.mulf %7, %7 : vector<3x4x8x256xf32>
    %9 = vector.shape_cast %2 : vector<4x8x1xf32> to vector<1x4x8x1xf32>
    %10 = vector.broadcast %9 : vector<1x4x8x1xf32> to vector<3x4x8x256xf32>
    %11 = arith.mulf %8, %10 : vector<3x4x8x256xf32>
    %12 = math.exp %11 : vector<3x4x8x256xf32>
    %c0_8 = arith.constant 0 : index
    %c0_9 = arith.constant 0 : index
    %c0_10 = arith.constant 0 : index
    %c0_11 = arith.constant 0 : index
    %13 = vector.load %arg5[%c0_8, %c0_9, %c0_10, %c0_11] : memref<3x4x8x256xf32, #tpu.memory_space<vmem>>, vector<3x4x8x256xf32>
    tpu.vector_store %arg5[%c0_8, %c0_9, %c0_10, %c0_11], %12 {strides = array<i32>} : memref<3x4x8x256xf32, #tpu.memory_space<vmem>>, vector<3x4x8x256xf32>,
    %cst = arith.constant dense<0.000000e+00> : vector<3x8x256xf32>
    %14 = vector.multi_reduction <add>, %11, %cst [1] : vector<3x4x8x256xf32> to vector<3x8x256xf32>
    %15 = math.exp %14 : vector<3x8x256xf32>
    %cst_12 = arith.constant 9.99999997E-7 : f32
    %16 = vector.broadcast %cst_12 : f32 to vector<3x8x256xf32>
    %17 = arith.maximumf %15, %16 : vector<3x8x256xf32>
    %c0_13 = arith.constant 0 : index
    %c0_14 = arith.constant 0 : index
    %c0_15 = arith.constant 0 : index
    %18 = vector.load %arg6[%c0_13, %c0_14, %c0_15] : memref<3x8x256xf32, #tpu.memory_space<vmem>>, vector<3x8x256xf32>
    tpu.vector_store %arg6[%c0_13, %c0_14, %c0_15], %17 {strides = array<i32>} : memref<3x8x256xf32, #tpu.memory_space<vmem>>, vector<3x8x256xf32>,
    return
  }
  func.func @transform_0(%arg0: i32, %arg1: i32) -> (i32, i32, i32) {
    %c0_i32 = arith.constant 0 : i32
    %c0_i32_0 = arith.constant 0 : i32
    return %arg0, %c0_i32, %arg1 : i32, i32, i32
  }
  func.func @transform_1(%arg0: i32, %arg1: i32) -> (i32, i32, i32) {
    %c0_i32 = arith.constant 0 : i32
    %c0_i32_0 = arith.constant 0 : i32
    %c0_i32_1 = arith.constant 0 : i32
    %c0_i32_2 = arith.constant 0 : i32
    return %c0_i32, %c0_i32_0, %c0_i32_1 : i32, i32, i32
  }
  func.func @transform_2(%arg0: i32, %arg1: i32) -> (i32, i32, i32) {
    %c0_i32 = arith.constant 0 : i32
    %c0_i32_0 = arith.constant 0 : i32
    %c0_i32_1 = arith.constant 0 : i32
    %c0_i32_2 = arith.constant 0 : i32
    return %c0_i32, %c0_i32_0, %c0_i32_1 : i32, i32, i32
  }
  func.func @transform_3(%arg0: i32, %arg1: i32) -> (i32, i32, i32, i32) {
    %c0_i32 = arith.constant 0 : i32
    %c0_i32_0 = arith.constant 0 : i32
    %c0_i32_1 = arith.constant 0 : i32
    return %arg0, %c0_i32, %c0_i32_0, %arg1 : i32, i32, i32, i32
  }
  func.func @transform_4(%arg0: i32, %arg1: i32) -> (i32, i32, i32) {
    %c0_i32 = arith.constant 0 : i32
    %c0_i32_0 = arith.constant 0 : i32
    return %arg0, %c0_i32, %arg1 : i32, i32, i32
  }
}

</mosaic_0001>

<llo_original>
// kernel: tpu_custom_call.1
$region0: #{tpu_custom_call.1}
  #allocation0 [shape = 'u32[]', space=smem, size = 0x4, offset = 0x4, fixed_abs, tag = 'smem constant byte address 0x4 - core index']
  #allocation1 [shape = 'u32[144,128]{1,0:T(1,128)}', space=vmem, size = 0x12000, scoped, tag = 'internal scratch']
  %s0 = inlined_call_operand.vmem [shape: f32[3,4,256], index: 0, kind: input, shape index: {}]
  %s1 = inlined_call_operand.vmem [shape: f32[4,8,1], index: 1, kind: input, shape index: {}]
  %s2 = inlined_call_operand.vmem [shape: f32[4,8,1], index: 2, kind: input, shape index: {}]
  %s3 = inlined_call_operand.hbm [shape: f32[3,4,8,256], index: 3, kind: output, shape index: {0}]
  %s4 = inlined_call_operand.hbm [shape: f32[3,8,256], index: 4, kind: output, shape index: {1}]
  %5 = xla_tuple %s3, %s4
  %s6 = sld [smem:[#allocation0]]
  $region30: #{tpu_custom_call.1} parent=0
    _
  %s8 = ssub.s32 1, %s6
  %s9 = scalar_select 0, %s8, %s6
  $region1: #{tpu_custom_call.1} parent=0
    #allocation2 [shape = 'u8[98304]{0}', space=vmem, size = 0x18000, scoped, tag = 'output window, operand 0, single buffered']
    #allocation3 [shape = 's32[1]{0}', space=sflag, size = 0x4, scoped, tag = 'scoped memory for tpu_custom_call.1']
    #allocation4 [shape = 'u8[24576]{0}', space=vmem, size = 0x6000, scoped, tag = 'output window, operand 1, single buffered']
    #allocation5 [shape = 's32[1]{0}', space=sflag, size = 0x4, scoped, tag = 'scoped memory for tpu_custom_call.1']
    %10 = vsyncpa [#allocation3], 0
    %11 = vsyncpa [#allocation5], 0
    // Predicated region
    $region2: #{tpu_custom_call.1} parent=1 // pred_check
      _
    $region3: #{tpu_custom_call.1} parent=1 // pred_check_branch
      %13 = sbr.rel (0) target = $region5
    $region4: #{tpu_custom_call.1} parent=1 // pred_region
      _
    $region5: #{tpu_custom_call.1} parent=1 // pred_fallthru
      _
    // Predicated region
    $region6: #{tpu_custom_call.1} parent=1 // pred_check
      _
    $region7: #{tpu_custom_call.1} parent=1 // pred_check_branch
      %15 = sbr.rel (0) target = $region9
    $region8: #{tpu_custom_call.1} parent=1 // pred_region
      _
    $region9: #{tpu_custom_call.1} parent=1 // pred_fallthru
      _
    // Predicated region
    $region10: #{tpu_custom_call.1} parent=1 // pred_check
      _
    $region11: #{tpu_custom_call.1} parent=1 // pred_check_branch
      %17 = sbr.rel (0) target = $region13
    $region12: #{tpu_custom_call.1} parent=1 // pred_region
      _
    $region13: #{tpu_custom_call.1} parent=1 // pred_fallthru
      _
    %v18 = vld [vmem:[%s0] sm:$0xff]
    %v19 = vld [vmem:[%s0 + $0x8] sm:$0xff]
    %v20 = vld [vmem:[%s0 + $0x10] sm:$0xff]
    %v21 = vld [vmem:[%s1] sm:$0xff]
    %v22 = vld [vmem:[%s1 + $0x8] sm:$0xff]
    %v23 = vld [vmem:[%s1 + $0x10] sm:$0xff]
    %v24 = vld [vmem:[%s1 + $0x18] sm:$0xff]
    %v25 = vld [vmem:[%s2] sm:$0xff]
    %v26 = vld [vmem:[%s2 + $0x8] sm:$0xff]
    %v27 = vld [vmem:[%s2 + $0x10] sm:$0xff]
    %v28 = vld [vmem:[%s2 + $0x18] sm:$0xff]
    %v33 = vunpack.c.l.s4 1966171168
    %v34 = vunpack.c.0.s8 %v33
    %v35 = vlaneseq
    %v36 = vshrl.u32 %v35, 7
    %v37 = vsub.s32 %v34, %v36
    %v38 = vrot.slane %v18, %v37
    %v39 = vcombine.high %v38, %v38
    %v41 = vunpack.c.l.s4 1966171168
    %v42 = vunpack.c.0.s8 %v41
    %v43 = vlaneseq
    %v44 = vshrl.u32 %v43, 7
    %v45 = vsub.s32 %v42, %v44
    %v46 = vrot.slane %v38, %v45
    %v48 = vunpack.c.l.s4 1966171168
    %v49 = vunpack.c.0.s8 %v48
    %v50 = vlaneseq
    %v51 = vshrl.u32 %v50, 7
    %v52 = vsub.s32 %v49, %v51
    %v53 = vrot.slane %v39, %v52
    %v54 = vcombine.high %v46, %v46
    %v55 = vcombine.high %v53, %v53
    %v57 = vunpack.c.l.s4 1966171168
    %v58 = vunpack.c.0.s8 %v57
    %v59 = vlaneseq
    %v60 = vshrl.u32 %v59, 7
    %v61 = vsub.s32 %v58, %v60
    %v62 = vrot.slane %v19, %v61
    %v63 = vcombine.high %v62, %v62
    %v65 = vunpack.c.l.s4 1966171168
    %v66 = vunpack.c.0.s8 %v65
    %v67 = vlaneseq
    %v68 = vshrl.u32 %v67, 7
    %v69 = vsub.s32 %v66, %v68
    %v70 = vrot.slane %v62, %v69
    %v72 = vunpack.c.l.s4 1966171168
    %v73 = vunpack.c.0.s8 %v72
    %v74 = vlaneseq
    %v75 = vshrl.u32 %v74, 7
    %v76 = vsub.s32 %v73, %v75
    %v77 = vrot.slane %v63, %v76
    %v78 = vcombine.high %v70, %v70
    %v79 = vcombine.high %v77, %v77
    %v81 = vunpack.c.l.s4 1966171168
    %v82 = vunpack.c.0.s8 %v81
    %v83 = vlaneseq
    %v84 = vshrl.u32 %v83, 7
    %v85 = vsub.s32 %v82, %v84
    %v86 = vrot.slane %v20, %v85
    %v87 = vcombine.high %v86, %v86
    %v89 = vunpack.c.l.s4 1966171168
    %v90 = vunpack.c.0.s8 %v89
    %v91 = vlaneseq
    %v92 = vshrl.u32 %v91, 7
    %v93 = vsub.s32 %v90, %v92
    %v94 = vrot.slane %v86, %v93
    %v96 = vunpack.c.l.s4 1966171168
    %v97 = vunpack.c.0.s8 %v96
    %v98 = vlaneseq
    %v99 = vshrl.u32 %v98, 7
    %v100 = vsub.s32 %v97, %v99
    %v101 = vrot.slane %v87, %v100
    %v102 = vcombine.high %v94, %v94
    %v103 = vcombine.high %v101, %v101
    %v104 = vlaneseq
    %v105 = vshrl.u32 %v104, 7
    %v106 = vsub.s32 0, %v105
    %v107 = vrot.slane %v46, %v106
    %v108 = vlaneseq
    %v109 = vshrl.u32 %v108, 7
    %v110 = vsub.s32 1, %v109
    %v111 = vrot.slane %v46, %v110
    %v112 = vlaneseq
    %v113 = vshrl.u32 %v112, 7
    %v114 = vsub.s32 0, %v113
    %v115 = vrot.slane %v53, %v114
    %v116 = vlaneseq
    %v117 = vshrl.u32 %v116, 7
    %v118 = vsub.s32 1, %v117
    %v119 = vrot.slane %v53, %v118
    %v120 = vlaneseq
    %v121 = vshrl.u32 %v120, 7
    %v122 = vsub.s32 0, %v121
    %v123 = vrot.slane %v54, %v122
    %v124 = vlaneseq
    %v125 = vshrl.u32 %v124, 7
    %v126 = vsub.s32 1, %v125
    %v127 = vrot.slane %v54, %v126
    %v128 = vlaneseq
    %v129 = vshrl.u32 %v128, 7
    %v130 = vsub.s32 0, %v129
    %v131 = vrot.slane %v55, %v130
    %v132 = vlaneseq
    %v133 = vshrl.u32 %v132, 7
    %v134 = vsub.s32 1, %v133
    %v135 = vrot.slane %v55, %v134
    %v136 = vlaneseq
    %v137 = vshrl.u32 %v136, 7
    %v138 = vsub.s32 0, %v137
    %v139 = vrot.slane %v70, %v138
    %v140 = vlaneseq
    %v141 = vshrl.u32 %v140, 7
    %v142 = vsub.s32 1, %v141
    %v143 = vrot.slane %v70, %v142
    %v144 = vlaneseq
    %v145 = vshrl.u32 %v144, 7
    %v146 = vsub.s32 0, %v145
    %v147 = vrot.slane %v77, %v146
    %v148 = vlaneseq
    %v149 = vshrl.u32 %v148, 7
    %v150 = vsub.s32 1, %v149
    %v151 = vrot.slane %v77, %v150
    %v152 = vlaneseq
    %v153 = vshrl.u32 %v152, 7
    %v154 = vsub.s32 0, %v153
    %v155 = vrot.slane %v78, %v154
    %v156 = vlaneseq
    %v157 = vshrl.u32 %v156, 7
    %v158 = vsub.s32 1, %v157
    %v159 = vrot.slane %v78, %v158
    %v160 = vlaneseq
    %v161 = vshrl.u32 %v160, 7
    %v162 = vsub.s32 0, %v161
    %v163 = vrot.slane %v79, %v162
    %v164 = vlaneseq
    %v165 = vshrl.u32 %v164, 7
    %v166 = vsub.s32 1, %v165
    %v167 = vrot.slane %v79, %v166
    %v168 = vlaneseq
    %v169 = vshrl.u32 %v168, 7
    %v170 = vsub.s32 0, %v169
    %v171 = vrot.slane %v94, %v170
    %v172 = vlaneseq
    %v173 = vshrl.u32 %v172, 7
    %v174 = vsub.s32 1, %v173
    %v175 = vrot.slane %v94, %v174
    %v176 = vlaneseq
    %v177 = vshrl.u32 %v176, 7
    %v178 = vsub.s32 0, %v177
    %v179 = vrot.slane %v101, %v178
    %v180 = vlaneseq
    %v181 = vshrl.u32 %v180, 7
    %v182 = vsub.s32 1, %v181
    %v183 = vrot.slane %v101, %v182
    %v184 = vlaneseq
    %v185 = vshrl.u32 %v184, 7
    %v186 = vsub.s32 0, %v185
    %v187 = vrot.slane %v102, %v186
    %v188 = vlaneseq
    %v189 = vshrl.u32 %v188, 7
    %v190 = vsub.s32 1, %v189
    %v191 = vrot.slane %v102, %v190
    %v192 = vlaneseq
    %v193 = vshrl.u32 %v192, 7
    %v194 = vsub.s32 0, %v193
    %v195 = vrot.slane %v103, %v194
    %v196 = vlaneseq
    %v197 = vshrl.u32 %v196, 7
    %v198 = vsub.s32 1, %v197
    %v199 = vrot.slane %v103, %v198
    %225 = vset.pattern.permute.xlu0 0
    %226 = vperm.xlu0 %225, %v21
    %v227 = vpop.permute.xlu0 %226
    %230 = vset.pattern.permute.xlu0 0
    %231 = vperm.xlu0 %230, %v22
    %v232 = vpop.permute.xlu0 %231
    %235 = vset.pattern.permute.xlu0 0
    %236 = vperm.xlu0 %235, %v23
    %v237 = vpop.permute.xlu0 %236
    %240 = vset.pattern.permute.xlu0 0
    %241 = vperm.xlu0 %240, %v24
    %v242 = vpop.permute.xlu0 %241
    %v244 = vsub.f32 %v107, %v227
    %v245 = vsub.f32 %v111, %v227
    %v246 = vsub.f32 %v115, %v232
    %v247 = vsub.f32 %v119, %v232
    %v248 = vsub.f32 %v123, %v237
    %v249 = vsub.f32 %v127, %v237
    %v250 = vsub.f32 %v131, %v242
    %v251 = vsub.f32 %v135, %v242
    %v252 = vsub.f32 %v139, %v227
    %v253 = vsub.f32 %v143, %v227
    %v254 = vsub.f32 %v147, %v232
    %v255 = vsub.f32 %v151, %v232
    %v256 = vsub.f32 %v155, %v237
    %v257 = vsub.f32 %v159, %v237
    %v258 = vsub.f32 %v163, %v242
    %v259 = vsub.f32 %v167, %v242
    %v260 = vsub.f32 %v171, %v227
    %v261 = vsub.f32 %v175, %v227
    %v262 = vsub.f32 %v179, %v232
    %v263 = vsub.f32 %v183, %v232
    %v264 = vsub.f32 %v187, %v237
    %v265 = vsub.f32 %v191, %v237
    %v266 = vsub.f32 %v195, %v242
    %v267 = vsub.f32 %v199, %v242
    %v268 = vmul.f32 %v244, %v244
    %v269 = vmul.f32 %v245, %v245
    %v270 = vmul.f32 %v246, %v246
    %v271 = vmul.f32 %v247, %v247
    %v272 = vmul.f32 %v248, %v248
    %v273 = vmul.f32 %v249, %v249
    %v274 = vmul.f32 %v250, %v250
    %v275 = vmul.f32 %v251, %v251
    %v276 = vmul.f32 %v252, %v252
    %v277 = vmul.f32 %v253, %v253
    %v278 = vmul.f32 %v254, %v254
    %v279 = vmul.f32 %v255, %v255
    %v280 = vmul.f32 %v256, %v256
    %v281 = vmul.f32 %v257, %v257
    %v282 = vmul.f32 %v258, %v258
    %v283 = vmul.f32 %v259, %v259
    %v284 = vmul.f32 %v260, %v260
    %v285 = vmul.f32 %v261, %v261
    %v286 = vmul.f32 %v262, %v262
    %v287 = vmul.f32 %v263, %v263
    %v288 = vmul.f32 %v264, %v264
    %v289 = vmul.f32 %v265, %v265
    %v290 = vmul.f32 %v266, %v266
    %v291 = vmul.f32 %v267, %v267
    %293 = vset.pattern.permute.xlu0 0
    %294 = vperm.xlu0 %293, %v25
    %v295 = vpop.permute.xlu0 %294
    %298 = vset.pattern.permute.xlu0 0
    %299 = vperm.xlu0 %298, %v26
    %v300 = vpop.permute.xlu0 %299
    %303 = vset.pattern.permute.xlu0 0
    %304 = vperm.xlu0 %303, %v27
    %v305 = vpop.permute.xlu0 %304
    %308 = vset.pattern.permute.xlu0 0
    %309 = vperm.xlu0 %308, %v28
    %v310 = vpop.permute.xlu0 %309
    %v312 = vmul.f32 %v268, %v295
    %v313 = vmul.f32 %v269, %v295
    %v314 = vmul.f32 %v270, %v300
    %v315 = vmul.f32 %v271, %v300
    %v316 = vmul.f32 %v272, %v305
    %v317 = vmul.f32 %v273, %v305
    %v318 = vmul.f32 %v274, %v310
    %v319 = vmul.f32 %v275, %v310
    %v320 = vmul.f32 %v276, %v295
    %v321 = vmul.f32 %v277, %v295
    %v322 = vmul.f32 %v278, %v300
    %v323 = vmul.f32 %v279, %v300
    %v324 = vmul.f32 %v280, %v305
    %v325 = vmul.f32 %v281, %v305
    %v326 = vmul.f32 %v282, %v310
    %v327 = vmul.f32 %v283, %v310
    %v328 = vmul.f32 %v284, %v295
    %v329 = vmul.f32 %v285, %v295
    %v330 = vmul.f32 %v286, %v300
    %v331 = vmul.f32 %v287, %v300
    %v332 = vmul.f32 %v288, %v305
    %v333 = vmul.f32 %v289, %v305
    %v334 = vmul.f32 %v290, %v310
    %v335 = vmul.f32 %v291, %v310
    %v336 = vmul.f32 %v312, 1.442695
    %v337 = vpow.pop %v336
    %v338 = vmul.f32 %v313, 1.442695
    %v339 = vpow.pop %v338
    %v340 = vmul.f32 %v314, 1.442695
    %v341 = vpow.pop %v340
    %v342 = vmul.f32 %v315, 1.442695
    %v343 = vpow.pop %v342
    %v344 = vmul.f32 %v316, 1.442695
    %v345 = vpow.pop %v344
    %v346 = vmul.f32 %v317, 1.442695
    %v347 = vpow.pop %v346
    %v348 = vmul.f32 %v318, 1.442695
    %v349 = vpow.pop %v348
    %v350 = vmul.f32 %v319, 1.442695
    %v351 = vpow.pop %v350
    %v352 = vmul.f32 %v320, 1.442695
    %v353 = vpow.pop %v352
    %v354 = vmul.f32 %v321, 1.442695
    %v355 = vpow.pop %v354
    %v356 = vmul.f32 %v322, 1.442695
    %v357 = vpow.pop %v356
    %v358 = vmul.f32 %v323, 1.442695
    %v359 = vpow.pop %v358
    %v360 = vmul.f32 %v324, 1.442695
    %v361 = vpow.pop %v360
    %v362 = vmul.f32 %v325, 1.442695
    %v363 = vpow.pop %v362
    %v364 = vmul.f32 %v326, 1.442695
    %v365 = vpow.pop %v364
    %v366 = vmul.f32 %v327, 1.442695
    %v367 = vpow.pop %v366
    %v368 = vmul.f32 %v328, 1.442695
    %v369 = vpow.pop %v368
    %v370 = vmul.f32 %v329, 1.442695
    %v371 = vpow.pop %v370
    %v372 = vmul.f32 %v330, 1.442695
    %v373 = vpow.pop %v372
    %v374 = vmul.f32 %v331, 1.442695
    %v375 = vpow.pop %v374
    %v376 = vmul.f32 %v332, 1.442695
    %v377 = vpow.pop %v376
    %v378 = vmul.f32 %v333, 1.442695
    %v379 = vpow.pop %v378
    %v380 = vmul.f32 %v334, 1.442695
    %v381 = vpow.pop %v380
    %v382 = vmul.f32 %v335, 1.442695
    %v383 = vpow.pop %v382
    %384 = vst [vmem:[#allocation2] sm:$0xff] %v337
    %385 = vst [vmem:[#allocation2 + $0x8] sm:$0xff] %v339
    %386 = vst [vmem:[#allocation2 + $0x10] sm:$0xff] %v341
    %387 = vst [vmem:[#allocation2 + $0x18] sm:$0xff] %v343
    %388 = vst [vmem:[#allocation2 + $0x20] sm:$0xff] %v345
    %389 = vst [vmem:[#allocation2 + $0x28] sm:$0xff] %v347
    %390 = vst [vmem:[#allocation2 + $0x30] sm:$0xff] %v349
    %391 = vst [vmem:[#allocation2 + $0x38] sm:$0xff] %v351
    %392 = vst [vmem:[#allocation2 + $0x40] sm:$0xff] %v353
    %393 = vst [vmem:[#allocation2 + $0x48] sm:$0xff] %v355
    %394 = vst [vmem:[#allocation2 + $0x50] sm:$0xff] %v357
    %395 = vst [vmem:[#allocation2 + $0x58] sm:$0xff] %v359
    %396 = vst [vmem:[#allocation2 + $0x60] sm:$0xff] %v361
    %397 = vst [vmem:[#allocation2 + $0x68] sm:$0xff] %v363
    %398 = vst [vmem:[#allocation2 + $0x70] sm:$0xff] %v365
    %399 = vst [vmem:[#allocation2 + $0x78] sm:$0xff] %v367
    %400 = vst [vmem:[#allocation2 + $0x80] sm:$0xff] %v369
    %401 = vst [vmem:[#allocation2 + $0x88] sm:$0xff] %v371
    %402 = vst [vmem:[#allocation2 + $0x90] sm:$0xff] %v373
    %403 = vst [vmem:[#allocation2 + $0x98] sm:$0xff] %v375
    %404 = vst [vmem:[#allocation2 + $0xa0] sm:$0xff] %v377
    %405 = vst [vmem:[#allocation2 + $0xa8] sm:$0xff] %v379
    %406 = vst [vmem:[#allocation2 + $0xb0] sm:$0xff] %v381
    %407 = vst [vmem:[#allocation2 + $0xb8] sm:$0xff] %v383
    %v408 = vadd.f32 %v312, %v314
    %v409 = vadd.f32 %v408, %v316
    %v410 = vadd.f32 %v409, %v318
    %v411 = vadd.f32 %v313, %v315
    %v412 = vadd.f32 %v411, %v317
    %v413 = vadd.f32 %v412, %v319
    %v414 = vadd.f32 %v320, %v322
    %v415 = vadd.f32 %v414, %v324
    %v416 = vadd.f32 %v415, %v326
    %v417 = vadd.f32 %v321, %v323
    %v418 = vadd.f32 %v417, %v325
    %v419 = vadd.f32 %v418, %v327
    %v420 = vadd.f32 %v328, %v330
    %v421 = vadd.f32 %v420, %v332
    %v422 = vadd.f32 %v421, %v334
    %v423 = vadd.f32 %v329, %v331
    %v424 = vadd.f32 %v423, %v333
    %v425 = vadd.f32 %v424, %v335
    %v426 = vmul.f32 %v410, 1.442695
    %v427 = vpow.pop %v426
    %v428 = vmul.f32 %v413, 1.442695
    %v429 = vpow.pop %v428
    %v430 = vmul.f32 %v416, 1.442695
    %v431 = vpow.pop %v430
    %v432 = vmul.f32 %v419, 1.442695
    %v433 = vpow.pop %v432
    %v434 = vmul.f32 %v422, 1.442695
    %v435 = vpow.pop %v434
    %v436 = vmul.f32 %v425, 1.442695
    %v437 = vpow.pop %v436
    %v438 = vmax.f32 %v427, 1e-06
    %v439 = vmax.f32 %v429, 1e-06
    %v440 = vmax.f32 %v431, 1e-06
    %v441 = vmax.f32 %v433, 1e-06
    %v442 = vmax.f32 %v435, 1e-06
    %v443 = vmax.f32 %v437, 1e-06
    %444 = vst [vmem:[#allocation4] sm:$0xff] %v438
    %445 = vst [vmem:[#allocation4 + $0x8] sm:$0xff] %v439
    %446 = vst [vmem:[#allocation4 + $0x10] sm:$0xff] %v440
    %447 = vst [vmem:[#allocation4 + $0x18] sm:$0xff] %v441
    %448 = vst [vmem:[#allocation4 + $0x20] sm:$0xff] %v442
    %449 = vst [vmem:[#allocation4 + $0x28] sm:$0xff] %v443
    // Predicated region
    $region14: #{tpu_custom_call.1} parent=1 // pred_check
      _
    $region15: #{tpu_custom_call.1} parent=1 // pred_check_branch
      %451 = sbr.rel (0) target = $region17
    $region16: #{tpu_custom_call.1} parent=1 // pred_region
      %s453 = ssub.s32 3072, 3072
      %454 = vsyncadd [#allocation3], %s453
      %s455 = sshll.u32 [#allocation2], 4
      %s456 = int_to_ptr.vmem [resolvable:$true] %s455
      %461 = dma.vmem_to_hbm [thread:$0]  %s456, 3072, %s3, [#allocation3], 256, 256, 16
    $region17: #{tpu_custom_call.1} parent=1 // pred_fallthru
      _
    // Predicated region
    $region18: #{tpu_custom_call.1} parent=1 // pred_check
      _
    $region19: #{tpu_custom_call.1} parent=1 // pred_check_branch
      %463 = sbr.rel (0) target = $region21
    $region20: #{tpu_custom_call.1} parent=1 // pred_region
      %s465 = ssub.s32 768, 768
      %466 = vsyncadd [#allocation5], %s465
      %s467 = sshll.u32 [#allocation4], 4
      %s468 = int_to_ptr.vmem [resolvable:$true] %s467
      %473 = dma.vmem_to_hbm [thread:$0]  %s468, 768, %s4, [#allocation5], 256, 256, 16
    $region21: #{tpu_custom_call.1} parent=1 // pred_fallthru
      _
    // Predicated region
    $region22: #{tpu_custom_call.1} parent=1 // pred_check
      _
    $region23: #{tpu_custom_call.1} parent=1 // pred_check_branch
      %475 = sbr.rel (0) target = $region25
    $region24: #{tpu_custom_call.1} parent=1 // pred_region
      %476 = dma.done [#allocation3], 3072
    $region25: #{tpu_custom_call.1} parent=1 // pred_fallthru
      _
    // Predicated region
    $region26: #{tpu_custom_call.1} parent=1 // pred_check
      _
    $region27: #{tpu_custom_call.1} parent=1 // pred_check_branch
      %478 = sbr.rel (0) target = $region29
    $region28: #{tpu_custom_call.1} parent=1 // pred_region
      %479 = dma.done [#allocation5], 768
    $region29: #{tpu_custom_call.1} parent=1 // pred_fallthru
      _
    %480 = vsyncpa [#allocation3], 1
    %481 = vsyncpa [#allocation5], 1

</llo_original>
